<compile_context>
chip_gen: v5e
topology: v5e:2x2
jax: 0.10.0
libtpu: 0.0.40
codegen_flags: <defaults>
</compile_context>

<pallas_src>
import functools

import jax
import jax.numpy as jnp
from jax.experimental import pallas as pl
from jax.experimental.pallas import tpu as pltpu

_LANE = 128
_NEG_SLOPE = 0.01  # nn.LeakyReLU default negative_slope


def _graph_layer_kernel(adj_ref, s_ref, center_ref, neigh_ref, cc_ref, nb_ref,
                        w_ref, b_ref, co_ref, no_ref, acc_ref):
    k = pl.program_id(1)

    # ---- K-tiled adjacency aggregation: acc += adj_tile @ s_tile -----------
    @pl.when(k == 0)
    def _():
        acc_ref[...] = jnp.zeros_like(acc_ref)

    # bf16 x bf16 MXU matmul, f32 accumulation (no f32 cast of adj).
    acc_ref[...] += jnp.dot(adj_ref[...], s_ref[...],
                            preferred_element_type=jnp.float32)

    # ---- epilogue on the last K step: dense layer + LeakyReLU --------------
    @pl.when(k == pl.num_programs(1) - 1)
    def _():
        agg = acc_ref[...]                              # (tm, C) f32
        cc = cc_ref[...]                                # (tm, 1)
        nb = nb_ref[...]                                # (tm, 1)
        # co_in = ce + cc*(adj@ce) + cc*(adj@ne) == center + cc*agg
        # no_in = ne + nb*(adj@ne) + nb*(adj@ce) == neigh  + nb*agg
        co_in = center_ref[...] + cc * agg              # (tm, C)
        no_in = neigh_ref[...] + nb * agg               # (tm, C)

        w = w_ref[...]                                  # (C, Gp), zero-padded lanes
        b = b_ref[...]                                  # (1, Gp)
        pre_co = jnp.dot(co_in, w, preferred_element_type=jnp.float32) + b
        pre_no = jnp.dot(no_in, w, preferred_element_type=jnp.float32) + b

        co_ref[...] = jnp.where(pre_co >= 0, pre_co, _NEG_SLOPE * pre_co)
        no_ref[...] = jnp.where(pre_no >= 0, pre_no, _NEG_SLOPE * pre_no)


@functools.lru_cache(maxsize=1)
def _vmem_capacity_bytes():
    try:
        return int(pltpu.get_tpu_info().vmem_capacity_bytes)
    except Exception:  # pragma: no cover - conservative fallback
        return 128 * 1024 * 1024


def prepare_graph_layer_params(weight, bias, adj):
    """One-time parameter prep (NOT in the per-call path):
    - transpose Linear weight to (code_size, graph_size) and zero-pad the
      output axis up to a multiple of 128 lanes (bias likewise),
    - keep adjacency in bf16 (exact for 0/1 entries)."""
    graph_size, code_size = weight.shape
    g_pad = max(_LANE, ((graph_size + _LANE - 1) // _LANE) * _LANE)
    w_pad = jnp.zeros((code_size, g_pad), jnp.float32)
    w_pad = w_pad.at[:, :graph_size].set(weight.T.astype(jnp.float32))
    b_pad = jnp.zeros((1, g_pad), jnp.float32)
    b_pad = b_pad.at[:, :graph_size].set(bias.astype(jnp.float32))
    adj_bf16 = adj.astype(jnp.bfloat16)
    return w_pad, b_pad, adj_bf16


@functools.partial(jax.jit,
                   static_argnames=("graph_size", "block_rows", "block_k"))
def graph_layer(code_x, neighbor, c_embeddings, n_embeddings,
                adj_bf16, w_pad, b_pad, *, graph_size,
                block_rows=None, block_k=None):
    """Forward pass of GraphLayer. Returns (co, no), each (N, graph_size)."""
    n, code_size = c_embeddings.shape
    g_pad = w_pad.shape[1]

    # Generation-aware tiling: larger row tiles on 128-MiB VMEM parts
    # (v5e/v6e), bounded on v7x (64 MiB). K-tiling bounds VMEM w.r.t. N.
    vmem_cap = _vmem_capacity_bytes()
    tm_default = 512 if vmem_cap >= 96 * 1024 * 1024 else 256
    tm = block_rows if block_rows is not None else min(n, tm_default)
    tk = block_k if block_k is not None else (n if n <= 2048 else 512)
    assert n % tm == 0, "node count must divide the row tile"
    assert n % tk == 0, "node count must divide the contraction tile"
    grid = (n // tm, n // tk)

    # ---- one-shot precompute (cheap XLA elementwise, outside the grid loop) --
    cc = code_x.reshape(n, 1).astype(jnp.float32)
    nb = neighbor.reshape(n, 1).astype(jnp.float32)
    ce = c_embeddings.astype(jnp.float32)
    ne = n_embeddings.astype(jnp.float32)
    center = cc * ce                                    # (N, C) f32
    neigh = nb * ne                                     # (N, C) f32
    s_all = (center + neigh).astype(jnp.bfloat16)       # (N, C) bf16 matmul RHS

    # ---- scheduling hints ----------------------------------------------------
    flops = 2 * n * n * code_size + 2 * 2 * n * code_size * g_pad
    bytes_accessed = (n * n * 2 + n * code_size * 2          # adj, s_all (bf16)
                      + 2 * n * code_size * 4 + 2 * n * 4    # center/neigh, cc/nb
                      + code_size * g_pad * 4 + g_pad * 4    # weight, bias
                      + 2 * n * g_pad * 4)                   # outputs
    cost = pl.CostEstimate(flops=flops, transcendentals=0,
                           bytes_accessed=bytes_accessed)

    # Rough double-buffered VMEM need (bytes), with headroom.
    est = (2 * tm * tk * 2 + 2 * tk * code_size * 2
           + 2 * 2 * tm * code_size * 4 + 2 * 2 * tm * 4
           + 2 * code_size * g_pad * 4 + 2 * g_pad * 4
           + 2 * 2 * tm * g_pad * 4 + tm * code_size * 4)
    vmem_limit = max(32 * 1024 * 1024, min(2 * est, (vmem_cap * 3) // 4))

    co_p, no_p = pl.pallas_call(
        _graph_layer_kernel,
        out_shape=(jax.ShapeDtypeStruct((n, g_pad), jnp.float32),
                   jax.ShapeDtypeStruct((n, g_pad), jnp.float32)),
        grid=grid,
        in_specs=[
            pl.BlockSpec((tm, tk), lambda i, k: (i, k)),          # adj tile (bf16)
            pl.BlockSpec((tk, code_size), lambda i, k: (k, 0)),   # s_all tile (bf16)
            pl.BlockSpec((tm, code_size), lambda i, k: (i, 0)),   # center row tile
            pl.BlockSpec((tm, code_size), lambda i, k: (i, 0)),   # neigh row tile
            pl.BlockSpec((tm, 1), lambda i, k: (i, 0)),           # cc row tile
            pl.BlockSpec((tm, 1), lambda i, k: (i, 0)),           # nb row tile
            pl.BlockSpec((code_size, g_pad), lambda i, k: (0, 0)),  # W^T (padded)
            pl.BlockSpec((1, g_pad), lambda i, k: (0, 0)),          # bias (padded)
        ],
        out_specs=(pl.BlockSpec((tm, g_pad), lambda i, k: (i, 0)),
                   pl.BlockSpec((tm, g_pad), lambda i, k: (i, 0))),
        scratch_shapes=[pltpu.VMEM((tm, code_size), jnp.float32)],  # aggregation acc
        compiler_params=pltpu.CompilerParams(
            dimension_semantics=("parallel", "arbitrary"),
            vmem_limit_bytes=int(vmem_limit)),
        cost_estimate=cost,
    )(adj_bf16, s_all, center, neigh, cc, nb, w_pad, b_pad)

    # Strip the lane padding back to the true graph_size.
    return co_p[:, :graph_size], no_p[:, :graph_size]


def _reference(code_x, neighbor, c_emb, n_emb, adj, weight, bias):
    cc = code_x[:, None]
    nb = neighbor[:, None]
    ce = cc * c_emb
    ne = nb * n_emb
    cce = cc * (adj @ ce)
    cne = cc * (adj @ ne)
    nne = nb * (adj @ ne)
    nce = nb * (adj @ ce)
    co_pre = (ce + cce + cne) @ weight.T + bias
    no_pre = (ne + nne + nce) @ weight.T + bias
    lrelu = lambda x: jnp.where(x >= 0, x, 0.01 * x)
    return lrelu(co_pre), lrelu(no_pre)


if __name__ == "__main__":
    key = jax.random.PRNGKey(0)
    k1, k2, k3, k4, k5, k6, k7 = jax.random.split(key, 7)

    N = 16            # number of graph nodes (codes)
    CODE_SIZE = 32    # embedding size
    GRAPH_SIZE = 64   # dense output size

    code_x = jax.random.bernoulli(k1, 0.4, (N,)).astype(jnp.float32)
    neighbor = jax.random.bernoulli(k2, 0.4, (N,)).astype(jnp.float32)
    c_embeddings = jax.random.normal(k3, (N, CODE_SIZE), jnp.float32)
    n_embeddings = jax.random.normal(k4, (N, CODE_SIZE), jnp.float32)
    adj = jax.random.bernoulli(k5, 0.3, (N, N)).astype(jnp.float32)

    # nn.Linear(code_size, graph_size) parameters
    weight = jax.random.normal(k6, (GRAPH_SIZE, CODE_SIZE), jnp.float32) * 0.1
    bias = jax.random.normal(k7, (GRAPH_SIZE,), jnp.float32) * 0.1

    # One-time prep (outside the per-call path).
    w_pad, b_pad, adj_bf16 = prepare_graph_layer_params(weight, bias, adj)

    co, no = graph_layer(code_x, neighbor, c_embeddings, n_embeddings,
                         adj_bf16, w_pad, b_pad, graph_size=GRAPH_SIZE)
    jax.block_until_ready((co, no))

    co_ref, no_ref = _reference(code_x, neighbor, c_embeddings, n_embeddings,
                                adj, weight, bias)
    # Tolerance relaxed from 1e-4 because the aggregation RHS (s_all) is fed to
    # the MXU in bf16 (adj 0/1 entries are exact in bf16).
    assert jnp.allclose(co, co_ref, atol=2e-2, rtol=2e-2)
    assert jnp.allclose(no, no_ref, atol=2e-2, rtol=2e-2)
    print("KERNEL_OK")
</pallas_src>

<mosaic_0001>
module attributes {stable_mosaic.version = 11 : i64} {
  func.func @_graph_layer_kernel(%arg0: i32, %arg1: i32, %arg2: memref<16x16xbf16, #tpu.memory_space<vmem>>, %arg3: memref<16x32xbf16, #tpu.memory_space<vmem>>, %arg4: memref<16x32xf32, #tpu.memory_space<vmem>>, %arg5: memref<16x32xf32, #tpu.memory_space<vmem>>, %arg6: memref<16x1xf32, #tpu.memory_space<vmem>>, %arg7: memref<16x1xf32, #tpu.memory_space<vmem>>, %arg8: memref<32x128xf32, #tpu.memory_space<vmem>>, %arg9: memref<1x128xf32, #tpu.memory_space<vmem>>, %arg10: memref<16x128xf32, #tpu.memory_space<vmem>>, %arg11: memref<16x128xf32, #tpu.memory_space<vmem>>, %arg12: memref<16x32xf32, #tpu.memory_space<vmem>>) attributes {dimension_semantics = [#tpu.dimension_semantics<parallel>, #tpu.dimension_semantics<arbitrary>], iteration_bounds = array<i64: 1, 1>, scalar_prefetch = 0 : i64, scratch_operands = 1 : i64, tpu.core_type = #tpu.core_type<tc>, window_params = [{transform_indices = @transform_0, window_bounds = array<i64: 16, 16>}, {transform_indices = @transform_1, window_bounds = array<i64: 16, 32>}, {transform_indices = @transform_2, window_bounds = array<i64: 16, 32>}, {transform_indices = @transform_3, window_bounds = array<i64: 16, 32>}, {transform_indices = @transform_4, window_bounds = array<i64: 16, 1>}, {transform_indices = @transform_5, window_bounds = array<i64: 16, 1>}, {pipeline_mode = #tpu.pipeline_mode<synchronous>, transform_indices = @transform_6, window_bounds = array<i64: 32, 128>}, {pipeline_mode = #tpu.pipeline_mode<synchronous>, transform_indices = @transform_7, window_bounds = array<i64: 1, 128>}, {transform_indices = @transform_8, window_bounds = array<i64: 16, 128>}, {transform_indices = @transform_9, window_bounds = array<i64: 16, 128>}]} {
    %c0_i32 = arith.constant 0 : i32
    %0 = arith.cmpi eq, %arg1, %c0_i32 : i32
    %1 = arith.extui %0 : i1 to i32
    %c0_i32_0 = arith.constant 0 : i32
    %2 = arith.cmpi ne, %1, %c0_i32_0 : i32
    scf.if %2 {
      %cst_10 = arith.constant 0.000000e+00 : f32
      %12 = vector.broadcast %cst_10 : f32 to vector<16x32xf32>
      %c0_11 = arith.constant 0 : index
      %c0_12 = arith.constant 0 : index
      %13 = vector.load %arg12[%c0_11, %c0_12] : memref<16x32xf32, #tpu.memory_space<vmem>>, vector<16x32xf32>
      tpu.vector_store %arg12[%c0_11, %c0_12], %12 {strides = array<i32>} : memref<16x32xf32, #tpu.memory_space<vmem>>, vector<16x32xf32>,
    } else {
    }
    %c0 = arith.constant 0 : index
    %c0_1 = arith.constant 0 : index
    %3 = vector.load %arg12[%c0, %c0_1] : memref<16x32xf32, #tpu.memory_space<vmem>>, vector<16x32xf32>
    %c0_2 = arith.constant 0 : index
    %c0_3 = arith.constant 0 : index
    %4 = vector.load %arg2[%c0_2, %c0_3] : memref<16x16xbf16, #tpu.memory_space<vmem>>, vector<16x16xbf16>
    %c0_4 = arith.constant 0 : index
    %c0_5 = arith.constant 0 : index
    %5 = vector.load %arg3[%c0_4, %c0_5] : memref<16x32xbf16, #tpu.memory_space<vmem>>, vector<16x32xbf16>
    %cst = arith.constant dense<0.000000e+00> : vector<16x32xf32>
    %6 = tpu.matmul %4, %5, %cst {dimension_numbers = #tpu.dot_dimension_numbers<[1], [0], [0], [1], [0, 0, 1, 1], [], []>} : vector<16x16xbf16>, vector<16x32xbf16>, vector<16x32xf32> -> vector<16x32xf32>
    %7 = arith.addf %3, %6 : vector<16x32xf32>
    %c0_6 = arith.constant 0 : index
    %c0_7 = arith.constant 0 : index
    %8 = vector.load %arg12[%c0_6, %c0_7] : memref<16x32xf32, #tpu.memory_space<vmem>>, vector<16x32xf32>
    tpu.vector_store %arg12[%c0_6, %c0_7], %7 {strides = array<i32>} : memref<16x32xf32, #tpu.memory_space<vmem>>, vector<16x32xf32>,
    %c0_i32_8 = arith.constant 0 : i32
    %9 = arith.cmpi eq, %arg1, %c0_i32_8 : i32
    %10 = arith.extui %9 : i1 to i32
    %c0_i32_9 = arith.constant 0 : i32
    %11 = arith.cmpi ne, %10, %c0_i32_9 : i32
    scf.if %11 {
      %c0_10 = arith.constant 0 : index
      %c0_11 = arith.constant 0 : index
      %12 = vector.load %arg12[%c0_10, %c0_11] : memref<16x32xf32, #tpu.memory_space<vmem>>, vector<16x32xf32>
      %c0_12 = arith.constant 0 : index
      %c0_13 = arith.constant 0 : index
      %13 = vector.load %arg6[%c0_12, %c0_13] : memref<16x1xf32, #tpu.memory_space<vmem>>, vector<16x1xf32>
      %c0_14 = arith.constant 0 : index
      %c0_15 = arith.constant 0 : index
      %14 = vector.load %arg7[%c0_14, %c0_15] : memref<16x1xf32, #tpu.memory_space<vmem>>, vector<16x1xf32>
      %c0_16 = arith.constant 0 : index
      %c0_17 = arith.constant 0 : index
      %15 = vector.load %arg4[%c0_16, %c0_17] : memref<16x32xf32, #tpu.memory_space<vmem>>, vector<16x32xf32>
      %16 = vector.broadcast %13 : vector<16x1xf32> to vector<16x32xf32>
      %17 = arith.mulf %16, %12 : vector<16x32xf32>
      %18 = arith.addf %15, %17 : vector<16x32xf32>
      %c0_18 = arith.constant 0 : index
      %c0_19 = arith.constant 0 : index
      %19 = vector.load %arg5[%c0_18, %c0_19] : memref<16x32xf32, #tpu.memory_space<vmem>>, vector<16x32xf32>
      %20 = vector.broadcast %14 : vector<16x1xf32> to vector<16x32xf32>
      %21 = arith.mulf %20, %12 : vector<16x32xf32>
      %22 = arith.addf %19, %21 : vector<16x32xf32>
      %c0_20 = arith.constant 0 : index
      %c0_21 = arith.constant 0 : index
      %23 = vector.load %arg8[%c0_20, %c0_21] : memref<32x128xf32, #tpu.memory_space<vmem>>, vector<32x128xf32>
      %c0_22 = arith.constant 0 : index
      %c0_23 = arith.constant 0 : index
      %24 = vector.load %arg9[%c0_22, %c0_23] : memref<1x128xf32, #tpu.memory_space<vmem>>, vector<1x128xf32>
      %cst_24 = arith.constant dense<0.000000e+00> : vector<16x128xf32>
      %25 = tpu.matmul %18, %23, %cst_24 {dimension_numbers = #tpu.dot_dimension_numbers<[1], [0], [0], [1], [0, 0, 1, 1], [], []>} : vector<16x32xf32>, vector<32x128xf32>, vector<16x128xf32> -> vector<16x128xf32>
      %26 = vector.broadcast %24 : vector<1x128xf32> to vector<16x128xf32>
      %27 = arith.addf %25, %26 : vector<16x128xf32>
      %cst_25 = arith.constant dense<0.000000e+00> : vector<16x128xf32>
      %28 = tpu.matmul %22, %23, %cst_25 {dimension_numbers = #tpu.dot_dimension_numbers<[1], [0], [0], [1], [0, 0, 1, 1], [], []>} : vector<16x32xf32>, vector<32x128xf32>, vector<16x128xf32> -> vector<16x128xf32>
      %29 = vector.broadcast %24 : vector<1x128xf32> to vector<16x128xf32>
      %30 = arith.addf %28, %29 : vector<16x128xf32>
      %cst_26 = arith.constant 0.000000e+00 : f32
      %31 = vector.broadcast %cst_26 : f32 to vector<16x128xf32>
      %32 = arith.cmpf oge, %27, %31 : vector<16x128xf32>
      %cst_27 = arith.constant 0.00999999977 : f32
      %33 = vector.broadcast %cst_27 : f32 to vector<16x128xf32>
      %34 = arith.mulf %33, %27 : vector<16x128xf32>
      %35 = arith.select %32, %27, %34 : vector<16x128xi1>, vector<16x128xf32>
      %c0_28 = arith.constant 0 : index
      %c0_29 = arith.constant 0 : index
      %36 = vector.load %arg10[%c0_28, %c0_29] : memref<16x128xf32, #tpu.memory_space<vmem>>, vector<16x128xf32>
      tpu.vector_store %arg10[%c0_28, %c0_29], %35 {strides = array<i32>} : memref<16x128xf32, #tpu.memory_space<vmem>>, vector<16x128xf32>,
      %cst_30 = arith.constant 0.000000e+00 : f32
      %37 = vector.broadcast %cst_30 : f32 to vector<16x128xf32>
      %38 = arith.cmpf oge, %30, %37 : vector<16x128xf32>
      %cst_31 = arith.constant 0.00999999977 : f32
      %39 = vector.broadcast %cst_31 : f32 to vector<16x128xf32>
      %40 = arith.mulf %39, %30 : vector<16x128xf32>
      %41 = arith.select %38, %30, %40 : vector<16x128xi1>, vector<16x128xf32>
      %c0_32 = arith.constant 0 : index
      %c0_33 = arith.constant 0 : index
      %42 = vector.load %arg11[%c0_32, %c0_33] : memref<16x128xf32, #tpu.memory_space<vmem>>, vector<16x128xf32>
      tpu.vector_store %arg11[%c0_32, %c0_33], %41 {strides = array<i32>} : memref<16x128xf32, #tpu.memory_space<vmem>>, vector<16x128xf32>,
    } else {
    }
    return
  }
  func.func @transform_0(%arg0: i32, %arg1: i32) -> (i32, i32) {
    %c0_i32 = arith.constant 0 : i32
    return %arg0, %arg1 : i32, i32
  }
  func.func @transform_1(%arg0: i32, %arg1: i32) -> (i32, i32) {
    %c0_i32 = arith.constant 0 : i32
    %c0_i32_0 = arith.constant 0 : i32
    return %arg1, %c0_i32 : i32, i32
  }
  func.func @transform_2(%arg0: i32, %arg1: i32) -> (i32, i32) {
    %c0_i32 = arith.constant 0 : i32
    %c0_i32_0 = arith.constant 0 : i32
    return %arg0, %c0_i32 : i32, i32
  }
  func.func @transform_3(%arg0: i32, %arg1: i32) -> (i32, i32) {
    %c0_i32 = arith.constant 0 : i32
    %c0_i32_0 = arith.constant 0 : i32
    return %arg0, %c0_i32 : i32, i32
  }
  func.func @transform_4(%arg0: i32, %arg1: i32) -> (i32, i32) {
    %c0_i32 = arith.constant 0 : i32
    %c0_i32_0 = arith.constant 0 : i32
    return %arg0, %c0_i32 : i32, i32
  }
  func.func @transform_5(%arg0: i32, %arg1: i32) -> (i32, i32) {
    %c0_i32 = arith.constant 0 : i32
    %c0_i32_0 = arith.constant 0 : i32
    return %arg0, %c0_i32 : i32, i32
  }
  func.func @transform_6(%arg0: i32, %arg1: i32) -> (i32, i32) {
    %c0_i32 = arith.constant 0 : i32
    %c0_i32_0 = arith.constant 0 : i32
    %c0_i32_1 = arith.constant 0 : i32
    return %c0_i32, %c0_i32_0 : i32, i32
  }
  func.func @transform_7(%arg0: i32, %arg1: i32) -> (i32, i32) {
    %c0_i32 = arith.constant 0 : i32
    %c0_i32_0 = arith.constant 0 : i32
    %c0_i32_1 = arith.constant 0 : i32
    return %c0_i32, %c0_i32_0 : i32, i32
  }
  func.func @transform_8(%arg0: i32, %arg1: i32) -> (i32, i32) {
    %c0_i32 = arith.constant 0 : i32
    %c0_i32_0 = arith.constant 0 : i32
    return %arg0, %c0_i32 : i32, i32
  }
  func.func @transform_9(%arg0: i32, %arg1: i32) -> (i32, i32) {
    %c0_i32 = arith.constant 0 : i32
    %c0_i32_0 = arith.constant 0 : i32
    return %arg0, %c0_i32 : i32, i32
  }
}

</mosaic_0001>

<llo_original>
// kernel: graph_layer.1
$region0: #{graph_layer.1}
  #allocation0 [shape = 'u32[]', space=smem, size = 0x4, offset = 0x4, fixed_abs, tag = 'smem constant byte address 0x4 - core index']
  #allocation1 [shape = 'u32[72,128]{1,0:T(1,128)}', space=vmem, size = 0x9000, scoped, tag = 'internal scratch']
  #allocation2 [shape = 'f32[16,32]{1,0:T(8,128)}', space=vmem, size = 0x2000, scoped, tag = 'scratch operand']
  %s0 = inlined_call_operand.vmem [shape: bf16[16,16], index: 0, kind: input, shape index: {}]
  %s1 = inlined_call_operand.vmem [shape: bf16[16,32], index: 1, kind: input, shape index: {}]
  %s2 = inlined_call_operand.vmem [shape: f32[16,32], index: 2, kind: input, shape index: {}]
  %s3 = inlined_call_operand.vmem [shape: f32[16,32], index: 3, kind: input, shape index: {}]
  %s4 = inlined_call_operand.vmem [shape: f32[16,1], index: 4, kind: input, shape index: {}]
  %s5 = inlined_call_operand.vmem [shape: f32[16,1], index: 5, kind: input, shape index: {}]
  %s6 = inlined_call_operand.vmem [shape: f32[32,128], index: 6, kind: input, shape index: {}]
  %s7 = inlined_call_operand.vmem [shape: f32[1,128], index: 7, kind: input, shape index: {}]
  %s8 = inlined_call_operand.hbm [shape: f32[16,128], index: 8, kind: output, shape index: {0}]
  %s9 = inlined_call_operand.hbm [shape: f32[16,128], index: 9, kind: output, shape index: {1}]
  %10 = xla_tuple %s8, %s9
  %s11 = sld [smem:[#allocation0]]
  $region58: #{graph_layer.1} parent=0
    _
  %s13 = ssub.s32 1, %s11
  %s14 = scalar_select 0, %s13, %s11
  $region1: #{graph_layer.1} parent=0
    #allocation3 [shape = 'u8[8192]{0}', space=vmem, size = 0x2000, scoped, tag = 'output window, operand 0, single buffered']
    #allocation4 [shape = 's32[1]{0}', space=sflag, size = 0x4, scoped, tag = 'scoped memory for graph_layer.1']
    #allocation5 [shape = 'u8[8192]{0}', space=vmem, size = 0x2000, scoped, tag = 'output window, operand 1, single buffered']
    #allocation6 [shape = 's32[1]{0}', space=sflag, size = 0x4, scoped, tag = 'scoped memory for graph_layer.1']
    %15 = vsyncpa [#allocation4], 0
    %16 = vsyncpa [#allocation6], 0
    // Predicated region
    $region2: #{graph_layer.1} parent=1 // pred_check
      _
    $region3: #{graph_layer.1} parent=1 // pred_check_branch
      %18 = sbr.rel (0) target = $region5
    $region4: #{graph_layer.1} parent=1 // pred_region
      _
    $region5: #{graph_layer.1} parent=1 // pred_fallthru
      _
    // Predicated region
    $region6: #{graph_layer.1} parent=1 // pred_check
      _
    $region7: #{graph_layer.1} parent=1 // pred_check_branch
      %20 = sbr.rel (0) target = $region9
    $region8: #{graph_layer.1} parent=1 // pred_region
      _
    $region9: #{graph_layer.1} parent=1 // pred_fallthru
      _
    // Predicated region
    $region10: #{graph_layer.1} parent=1 // pred_check
      _
    $region11: #{graph_layer.1} parent=1 // pred_check_branch
      %22 = sbr.rel (0) target = $region13
    $region12: #{graph_layer.1} parent=1 // pred_region
      _
    $region13: #{graph_layer.1} parent=1 // pred_fallthru
      _
    // Predicated region
    $region14: #{graph_layer.1} parent=1 // pred_check
      _
    $region15: #{graph_layer.1} parent=1 // pred_check_branch
      %24 = sbr.rel (0) target = $region17
    $region16: #{graph_layer.1} parent=1 // pred_region
      _
    $region17: #{graph_layer.1} parent=1 // pred_fallthru
      _
    // Predicated region
    $region18: #{graph_layer.1} parent=1 // pred_check
      _
    $region19: #{graph_layer.1} parent=1 // pred_check_branch
      %26 = sbr.rel (0) target = $region21
    $region20: #{graph_layer.1} parent=1 // pred_region
      _
    $region21: #{graph_layer.1} parent=1 // pred_fallthru
      _
    // Predicated region
    $region22: #{graph_layer.1} parent=1 // pred_check
      _
    $region23: #{graph_layer.1} parent=1 // pred_check_branch
      %28 = sbr.rel (0) target = $region25
    $region24: #{graph_layer.1} parent=1 // pred_region
      _
    $region25: #{graph_layer.1} parent=1 // pred_fallthru
      _
    // Predicated region
    $region26: #{graph_layer.1} parent=1 // pred_check
      _
    $region27: #{graph_layer.1} parent=1 // pred_check_branch
      %30 = sbr.rel (0) target = $region29
    $region28: #{graph_layer.1} parent=1 // pred_region
      _
    $region29: #{graph_layer.1} parent=1 // pred_fallthru
      _
    // Predicated region
    $region30: #{graph_layer.1} parent=1 // pred_check
      _
    $region31: #{graph_layer.1} parent=1 // pred_check_branch
      %32 = sbr.rel (0) target = $region33
    $region32: #{graph_layer.1} parent=1 // pred_region
      _
    $region33: #{graph_layer.1} parent=1 // pred_fallthru
      _
    %p34 = scmp.eq.s32.totalorder 0, 0
    // Predicated region
    $region34: #{graph_layer.1} parent=1 // pred_check
      %p35 = pneg %p34
    $region35: #{graph_layer.1} parent=1 // pred_check_branch
      %37 = sbr.rel (%p35) target = $region37
    $region36: #{graph_layer.1} parent=1 // pred_region
      %vm38 = vcmask 261120
      %39 = vst.msk [vmem:[#allocation2] sm:$0xff] %vm38, 0.0
      %40 = vst.msk [vmem:[#allocation2 + $0x8] sm:$0xff] %vm38, 0.0
    $region37: #{graph_layer.1} parent=1 // pred_fallthru
      _
    %v41 = vld [vmem:[#allocation2] sm:$0xff]
    %v42 = vld [vmem:[#allocation2 + $0x8] sm:$0xff]
    %v43 = vld [vmem:[%s0] sm:$0xf]
    %v44 = vld [vmem:[%s0 + $0x4] sm:$0xf]
    %v45 = vld [vmem:[%s1] sm:$0xf]
    %v46 = vld [vmem:[%s1 + $0x4] sm:$0xf]
    %v49 = vunpack.c.l.b16 %v43
    %v50 = vunpack.c.l.b16 %v44
    %v51 = vpack.c.b16 %v50, %v49
    %v54 = vunpack.c.l.b16 %v45
    %v55 = vunpack.c.l.b16 %v46
    %v56 = vpack.c.b16 %v55, %v54
    %vm58 = vcmask 130048
    %v60 = vsel %vm58, %v51, 0
    %62 = vmatpush.bf16.msra.mxu0 0
    %63 = vmatpush.bf16.msra.mxu0 0
    %64 = vmatpush.bf16.msra.mxu0 0
    %65 = vmatpush.bf16.msra.mxu0 0
    %66 = vmatpush.bf16.msra.mxu0 0
    %67 = vmatpush.bf16.msra.mxu0 0
    %68 = vmatpush.bf16.msra.mxu0 0
    %69 = vmatpush.bf16.msra.mxu0 %v56
    %70 = vmatmul.bf16.gmra.mxu0 %v60
    %v71 = vpop.f32.mrf.mxu0
    %v72 = vadd.f32 0.0, %v71
    %v73 = vpop.f32.mrf.mxu0
    %v74 = vadd.f32 0.0, %v73
    %75 = vdwg.mxu0
    %v76 = vadd.f32 %v41, %v72
    %v77 = vadd.f32 %v42, %v74
    %vm78 = vcmask 261120
    %79 = vst.msk [vmem:[#allocation2] sm:$0xff] %vm78, %v76
    %80 = vst.msk [vmem:[#allocation2 + $0x8] sm:$0xff] %vm78, %v77
    // Predicated region
    $region38: #{graph_layer.1} parent=1 // pred_check
      %p81 = pneg %p34
    $region39: #{graph_layer.1} parent=1 // pred_check_branch
      %83 = sbr.rel (%p81) target = $region41
    $region40: #{graph_layer.1} parent=1 // pred_region
      %v84 = vld [vmem:[#allocation2] sm:$0xff]
      %v85 = vld [vmem:[#allocation2 + $0x8] sm:$0xff]
      %v86 = vld [vmem:[%s4] sm:$0xff]
      %v87 = vld [vmem:[%s4 + $0x8] sm:$0xff]
      %v88 = vld [vmem:[%s5] sm:$0xff]
      %v89 = vld [vmem:[%s5 + $0x8] sm:$0xff]
      %v90 = vld [vmem:[%s2] sm:$0xff]
      %v91 = vld [vmem:[%s2 + $0x8] sm:$0xff]
      %93 = vset.pattern.permute.xlu0 0
      %94 = vperm.xlu0 %93, %v86
      %v95 = vpop.permute.xlu0 %94
      %98 = vset.pattern.permute.xlu0 0
      %99 = vperm.xlu0 %98, %v87
      %v100 = vpop.permute.xlu0 %99
      %v102 = vmul.f32 %v95, %v84
      %v103 = vmul.f32 %v100, %v85
      %v104 = vadd.f32 %v90, %v102
      %v105 = vadd.f32 %v91, %v103
      %v106 = vld [vmem:[%s3] sm:$0xff]
      %v107 = vld [vmem:[%s3 + $0x8] sm:$0xff]
      %109 = vset.pattern.permute.xlu0 0
      %110 = vperm.xlu0 %109, %v88
      %v111 = vpop.permute.xlu0 %110
      %114 = vset.pattern.permute.xlu0 0
      %115 = vperm.xlu0 %114, %v89
      %v116 = vpop.permute.xlu0 %115
      %v118 = vmul.f32 %v111, %v84
      %v119 = vmul.f32 %v116, %v85
      %v120 = vadd.f32 %v106, %v118
      %v121 = vadd.f32 %v107, %v119
      %v122 = vld [vmem:[%s6] sm:$0xff]
      %v123 = vld [vmem:[%s6 + $0x8] sm:$0xff]
      %v124 = vld [vmem:[%s6 + $0x10] sm:$0xff]
      %v125 = vld [vmem:[%s6 + $0x18] sm:$0xff]
      %v126 = vld [vmem:[%s7] sm:$0x1]
      %v128 = vperm.slane %v126, 0
      %v131 = vsel %vm78, %v104, 0
      %v134 = vsel %vm78, %v105, 0
      %136 = vmatpush.msra.mxu0 0.0
      %137 = vmatpush.msra.mxu0 0.0
      %138 = vmatpush.msra.mxu0 0.0
      %139 = vmatpush.msra.mxu0 0.0
      %140 = vmatpush.msra.mxu0 0.0
      %141 = vmatpush.msra.mxu0 0.0
      %142 = vmatpush.msra.mxu0 0.0
      %143 = vmatpush.msra.mxu0 0.0
      %144 = vmatpush.msra.mxu0 0.0
      %145 = vmatpush.msra.mxu0 0.0
      %146 = vmatpush.msra.mxu0 0.0
      %147 = vmatpush.msra.mxu0 0.0
      %148 = vmatpush.msra.mxu0 %v125
      %149 = vmatpush.msra.mxu0 %v124
      %150 = vmatpush.msra.mxu0 %v123
      %151 = vmatpush.msra.mxu0 %v122
      %152 = vmatmul.f32.gmra.mxu0 %v131
      %v153 = vpop.f32.mrf.mxu0
      %v154 = vadd.f32 %v128, %v153
      %155 = vmatmul.f32.gmra.mxu0 %v134
      %v156 = vpop.f32.mrf.mxu0
      %v157 = vadd.f32 %v128, %v156
      %158 = vdwg.mxu0
      %v160 = vsel %vm78, %v120, 0
      %v163 = vsel %vm78, %v121, 0
      %165 = vmatpush.msra.mxu0 0.0
      %166 = vmatpush.msra.mxu0 0.0
      %167 = vmatpush.msra.mxu0 0.0
      %168 = vmatpush.msra.mxu0 0.0
      %169 = vmatpush.msra.mxu0 0.0
      %170 = vmatpush.msra.mxu0 0.0
      %171 = vmatpush.msra.mxu0 0.0
      %172 = vmatpush.msra.mxu0 0.0
      %173 = vmatpush.msra.mxu0 0.0
      %174 = vmatpush.msra.mxu0 0.0
      %175 = vmatpush.msra.mxu0 0.0
      %176 = vmatpush.msra.mxu0 0.0
      %177 = vmatpush.msra.mxu0 %v125
      %178 = vmatpush.msra.mxu0 %v124
      %179 = vmatpush.msra.mxu0 %v123
      %180 = vmatpush.msra.mxu0 %v122
      %181 = vmatmul.f32.gmra.mxu0 %v160
      %v182 = vpop.f32.mrf.mxu0
      %v183 = vadd.f32 %v128, %v182
      %184 = vmatmul.f32.gmra.mxu0 %v163
      %v185 = vpop.f32.mrf.mxu0
      %v186 = vadd.f32 %v128, %v185
      %187 = vdwg.mxu0
      %vm188 = vcmp.ge.f32.partialorder %v154, 0.0
      %vm189 = vcmp.ge.f32.partialorder %v157, 0.0
      %v190 = vmul.f32 %v154, 0.01
      %v191 = vmul.f32 %v157, 0.01
      %v192 = vsel %vm188, %v154, %v190
      %v193 = vsel %vm189, %v157, %v191
      %194 = vst [vmem:[#allocation3] sm:$0xff] %v192
      %195 = vst [vmem:[#allocation3 + $0x8] sm:$0xff] %v193
      %vm196 = vcmp.ge.f32.partialorder %v183, 0.0
      %vm197 = vcmp.ge.f32.partialorder %v186, 0.0
      %v198 = vmul.f32 %v183, 0.01
      %v199 = vmul.f32 %v186, 0.01
      %v200 = vsel %vm196, %v183, %v198
      %v201 = vsel %vm197, %v186, %v199
      %202 = vst [vmem:[#allocation5] sm:$0xff] %v200
      %203 = vst [vmem:[#allocation5 + $0x8] sm:$0xff] %v201
    $region41: #{graph_layer.1} parent=1 // pred_fallthru
      _
    // Predicated region
    $region42: #{graph_layer.1} parent=1 // pred_check
      _
    $region43: #{graph_layer.1} parent=1 // pred_check_branch
      %205 = sbr.rel (0) target = $region45
    $region44: #{graph_layer.1} parent=1 // pred_region
      %207 = vsyncadd [#allocation4], 0
      %s208 = sshll.u32 [#allocation3], 4
      %s209 = int_to_ptr.vmem [resolvable:$true] %s208
      %s210 = sshll.u32 %s8, 4
      %s211 = int_to_ptr.hbm [resolvable:$true] %s210
      %216 = dma.vmem_to_hbm [thread:$0]  %s209, 256, %s211, [#allocation4], 128, 128, 8
    $region45: #{graph_layer.1} parent=1 // pred_fallthru
      _
    // Predicated region
    $region46: #{graph_layer.1} parent=1 // pred_check
      _
    $region47: #{graph_layer.1} parent=1 // pred_check_branch
      %218 = sbr.rel (0) target = $region49
    $region48: #{graph_layer.1} parent=1 // pred_region
      %220 = vsyncadd [#allocation6], 0
      %s221 = sshll.u32 [#allocation5], 4
      %s222 = int_to_ptr.vmem [resolvable:$true] %s221
      %s223 = sshll.u32 %s9, 4
      %s224 = int_to_ptr.hbm [resolvable:$true] %s223
      %229 = dma.vmem_to_hbm [thread:$0]  %s222, 256, %s224, [#allocation6], 128, 128, 8
    $region49: #{graph_layer.1} parent=1 // pred_fallthru
      _
    // Predicated region
    $region50: #{graph_layer.1} parent=1 // pred_check
      _
    $region51: #{graph_layer.1} parent=1 // pred_check_branch
      %231 = sbr.rel (0) target = $region53
    $region52: #{graph_layer.1} parent=1 // pred_region
      %233 = dma.done [#allocation4], 256
    $region53: #{graph_layer.1} parent=1 // pred_fallthru
      _
    // Predicated region
    $region54: #{graph_layer.1} parent=1 // pred_check
      _
    $region55: #{graph_layer.1} parent=1 // pred_check_branch
      %235 = sbr.rel (0) target = $region57
    $region56: #{graph_layer.1} parent=1 // pred_region
      %237 = dma.done [#allocation6], 256
    $region57: #{graph_layer.1} parent=1 // pred_fallthru
      _
    %238 = vsyncpa [#allocation4], 1
    %239 = vsyncpa [#allocation6], 1

</llo_original>
